<compile_context>
chip_gen: v7x
topology: tpu7x:2x2x1
jax: 0.10.0
libtpu: 0.0.40
codegen_flags: <defaults>
</compile_context>

<pallas_src>
import jax
import jax.numpy as jnp
from jax.experimental import pallas as pl
from jax.experimental.pallas import tpu as pltpu


def build_pe_table(d_model: int, max_len: int = 100) -> jnp.ndarray:
    """Sinusoidal positional-encoding table, shape (max_len, d_model)."""
    position = jnp.arange(0, max_len, dtype=jnp.float32)[:, None]              # (max_len, 1)
    div_term = jnp.exp(
        jnp.arange(0, d_model, 2, dtype=jnp.float32)
        * (-jnp.log(jnp.float32(10000.0)) / d_model)
    )                                                                           # (ceil(d/2),)
    angles = position * div_term                                                # (max_len, ceil(d/2))
    pe = jnp.zeros((max_len, d_model), dtype=jnp.float32)
    pe = pe.at[:, 0::2].set(jnp.sin(angles))
    pe = pe.at[:, 1::2].set(jnp.cos(angles)[:, : d_model // 2])
    return pe


def _vmem_budget() -> tuple[int, int]:
    """(tile_target_bytes, vmem_limit_bytes) sized for this generation's VMEM."""
    vmem_cap = 64 * 1024 * 1024  # conservative default (v7x per-core VMEM)
    try:
        info = pltpu.get_tpu_info()
        vmem_cap = int(getattr(info, "vmem_capacity_bytes", vmem_cap))
    except Exception:
        pass
    if vmem_cap >= 128 * 1024 * 1024:           # v5e / v6e: 128 MiB VMEM
        return 8 * 1024 * 1024, 64 * 1024 * 1024
    return 4 * 1024 * 1024, 48 * 1024 * 1024    # v7x: 64 MiB VMEM


def _pick_lane_dim(d_model: int, flat: int, max_lanes: int = 1024) -> int:
    """Lane (last) dim C for the (R, C) view: a multiple of 128 dividing flat if possible."""
    if d_model % 128 == 0:
        return d_model
    c = (min(flat, max_lanes) // 128) * 128
    while c >= 128:
        if flat % c == 0:
            return c
        c -= 128
    return d_model  # awkward shapes: keep the natural last dim (full-extent block, still legal)


def _pe_add_kernel(x_ref, pe_ref, o_ref):
    # x_ref / o_ref: (TB, TR, C); pe_ref: (TR, C) broadcast over the batch-tile dim.
    o_ref[...] = (x_ref[...] + pe_ref[...]).astype(o_ref.dtype)


def positional_encoding_forward(x: jnp.ndarray, pe_table: jnp.ndarray) -> jnp.ndarray:
    """x: (B, S, D); pe_table: (max_len, D). Returns x + pe[:S] (broadcast over batch)."""
    B, S, D = x.shape
    max_len = pe_table.shape[0]
    if S > max_len:
        raise ValueError(f"sequence length {S} exceeds positional table max_len {max_len}")

    pe = pe_table[:S, :].astype(x.dtype)                  # glue: slice + dtype match
    itemsize = jnp.dtype(x.dtype).itemsize

    flat = S * D
    C = _pick_lane_dim(D, flat)                           # lane-dense last dim when possible
    R = flat // C

    target_bytes, vmem_limit = _vmem_budget()
    row_align = 8 * max(1, 4 // itemsize)                 # 8 rows f32, 16 bf16, 32 int8/fp8
    row_bytes = C * itemsize
    slab_bytes = R * row_bytes                            # one batch element's (R, C) slab

    if slab_bytes <= target_bytes:
        # Small per-batch slab: take all rows, fold multiple batch elements per tile.
        TR = R
        TB = max(1, min(B, target_bytes // max(slab_bytes, 1)))
    else:
        # Large slab: one batch element per tile, ~target_bytes of aligned rows.
        TB = 1
        TR = min(R, max(row_align, (target_bytes // row_bytes) // row_align * row_align))

    x3 = x.reshape(B, R, C)
    pe2 = pe.reshape(R, C)
    # Batch innermost -> pe block index constant across the batch loop (DMA elided).
    grid = (pl.cdiv(R, TR), pl.cdiv(B, TB))

    out = pl.pallas_call(
        _pe_add_kernel,
        out_shape=jax.ShapeDtypeStruct((B, R, C), x.dtype),
        grid_spec=pltpu.PrefetchScalarGridSpec(
            num_scalar_prefetch=0,
            grid=grid,
            in_specs=[
                pl.BlockSpec((TB, TR, C), lambda r, b: (b, r, 0)),   # x tile
                pl.BlockSpec((TR, C), lambda r, b: (r, 0)),          # shared pe tile
            ],
            out_specs=pl.BlockSpec((TB, TR, C), lambda r, b: (b, r, 0)),
        ),
        compiler_params=pltpu.CompilerParams(
            dimension_semantics=("parallel", "parallel"),   # independent axes; helps v7x 2-TC
            vmem_limit_bytes=vmem_limit,
        ),
    )(x3, pe2)

    return out.reshape(B, S, D)


if __name__ == "__main__":
    MAX_LEN = 100
    key = jax.random.PRNGKey(0)

    checks = [
        ((2, 8, 32), jnp.float32),     # module-scale shape; D < 128 -> lane-packed (R, C) view
        ((2, 16, 128), jnp.float32),   # lane-dense D path
        ((2, 8, 32), jnp.bfloat16),    # reduced-precision input (pe cast to bf16 in wrapper)
        ((5, 100, 4096), jnp.float32), # multi-tile / ragged-grid path
    ]

    for (B, S, D), dtype in checks:
        key, sub = jax.random.split(key)
        x = jax.random.normal(sub, (B, S, D), dtype=jnp.float32).astype(dtype)
        pe_table = build_pe_table(D, MAX_LEN)

        ref = x + pe_table[None, :S, :].astype(dtype)

        out = jax.block_until_ready(positional_encoding_forward(x, pe_table))

        assert out.shape == (B, S, D) and out.dtype == dtype
        tol = 1e-6 if dtype == jnp.float32 else 1e-2
        assert jnp.allclose(out.astype(jnp.float32), ref.astype(jnp.float32), atol=tol), (
            f"mismatch vs reference for shape {(B, S, D)} dtype {dtype}"
        )

    print("KERNEL_OK")
</pallas_src>

<mosaic_0001>
module attributes {stable_mosaic.version = 11 : i64} {
  func.func @_pe_add_kernel(%arg0: i32, %arg1: i32, %arg2: memref<2x1x256xf32, #tpu.memory_space<vmem>>, %arg3: memref<1x256xf32, #tpu.memory_space<vmem>>, %arg4: memref<2x1x256xf32, #tpu.memory_space<vmem>>) attributes {dimension_semantics = [#tpu.dimension_semantics<parallel>, #tpu.dimension_semantics<parallel>], iteration_bounds = array<i64: 1, 1>, scalar_prefetch = 0 : i64, scratch_operands = 0 : i64, tpu.core_type = #tpu.core_type<tc>, window_params = [{transform_indices = @transform_0, window_bounds = array<i64: 2, 1, 256>}, {transform_indices = @transform_1, window_bounds = array<i64: 1, 256>}, {transform_indices = @transform_2, window_bounds = array<i64: 2, 1, 256>}]} {
    %c0 = arith.constant 0 : index
    %c0_0 = arith.constant 0 : index
    %c0_1 = arith.constant 0 : index
    %0 = vector.load %arg2[%c0, %c0_0, %c0_1] : memref<2x1x256xf32, #tpu.memory_space<vmem>>, vector<2x1x256xf32>
    %c0_2 = arith.constant 0 : index
    %c0_3 = arith.constant 0 : index
    %1 = vector.load %arg3[%c0_2, %c0_3] : memref<1x256xf32, #tpu.memory_space<vmem>>, vector<1x256xf32>
    %2 = vector.shape_cast %1 : vector<1x256xf32> to vector<1x1x256xf32>
    %3 = vector.broadcast %2 : vector<1x1x256xf32> to vector<2x1x256xf32>
    %4 = arith.addf %0, %3 : vector<2x1x256xf32>
    %c0_4 = arith.constant 0 : index
    %c0_5 = arith.constant 0 : index
    %c0_6 = arith.constant 0 : index
    %5 = vector.load %arg4[%c0_4, %c0_5, %c0_6] : memref<2x1x256xf32, #tpu.memory_space<vmem>>, vector<2x1x256xf32>
    tpu.vector_store %arg4[%c0_4, %c0_5, %c0_6], %4 {strides = array<i32>} : memref<2x1x256xf32, #tpu.memory_space<vmem>>, vector<2x1x256xf32>,
    return
  }
  func.func @transform_0(%arg0: i32, %arg1: i32) -> (i32, i32, i32) {
    %c0_i32 = arith.constant 0 : i32
    %c0_i32_0 = arith.constant 0 : i32
    return %arg1, %arg0, %c0_i32 : i32, i32, i32
  }
  func.func @transform_1(%arg0: i32, %arg1: i32) -> (i32, i32) {
    %c0_i32 = arith.constant 0 : i32
    %c0_i32_0 = arith.constant 0 : i32
    return %arg0, %c0_i32 : i32, i32
  }
  func.func @transform_2(%arg0: i32, %arg1: i32) -> (i32, i32, i32) {
    %c0_i32 = arith.constant 0 : i32
    %c0_i32_0 = arith.constant 0 : i32
    return %arg1, %arg0, %c0_i32 : i32, i32, i32
  }
}

</mosaic_0001>

<llo_original>
// kernel: tpu_custom_call.1
$region0: #{tpu_custom_call.1}
  #allocation0 [shape = 'u32[]', space=smem, size = 0x4, offset = 0x4, fixed_abs, tag = 'smem constant byte address 0x4 - core index']
  #allocation1 [shape = 'u32[144,128]{1,0:T(1,128)}', space=vmem, size = 0x12000, scoped, tag = 'internal scratch']
  %s0 = inlined_call_operand.hbm [shape: f32[2,1,256], index: 0, kind: input, shape index: {}]
  %s1 = inlined_call_operand.vmem [shape: f32[1,256], index: 1, kind: input, shape index: {}]
  %s2 = inlined_call_operand.hbm [shape: f32[2,1,256], index: 2, kind: output, shape index: {}]
  %s3 = sld [smem:[#allocation0]]
  $region22: #{tpu_custom_call.1} parent=0
    _
  %s5 = ssub.s32 1, %s3
  %s6 = scalar_select 0, %s5, %s3
  $region1: #{tpu_custom_call.1} parent=0
    #allocation2 [shape = 'u8[2048]{0}', space=vmem, size = 0x800, scoped, tag = 'input window, operand 0, single buffered']
    #allocation3 [shape = 's32[1]{0}', space=sflag, size = 0x4, scoped, tag = 'scoped memory for tpu_custom_call.1']
    #allocation4 [shape = 's32[1]{0}', space=sflag, size = 0x4, scoped, tag = 'scoped memory for tpu_custom_call.1']
    #allocation5 [shape = 'u8[2048]{0}', space=vmem, size = 0x800, scoped, tag = 'output window, operand 0, single buffered']
    %7 = vsyncpa [#allocation3], 0
    %8 = vsyncpa [#allocation4], 0
    // Predicated region
    $region2: #{tpu_custom_call.1} parent=1 // pred_check
      _
    $region3: #{tpu_custom_call.1} parent=1 // pred_check_branch
      %10 = sbr.rel (0) target = $region5
    $region4: #{tpu_custom_call.1} parent=1 // pred_region
      %s12 = ssub.s32 64, 64
      %13 = vsyncadd [#allocation3], %s12
      %s14 = sshll.u32 [#allocation2], 4
      %s15 = int_to_ptr.vmem [resolvable:$true] %s14
      %20 = dma.hbm_to_vmem [thread:$0]  %s0, 64, %s15, [#allocation3], 32, 32, 2
    $region5: #{tpu_custom_call.1} parent=1 // pred_fallthru
      _
    // Predicated region
    $region6: #{tpu_custom_call.1} parent=1 // pred_check
      _
    $region7: #{tpu_custom_call.1} parent=1 // pred_check_branch
      %22 = sbr.rel (0) target = $region9
    $region8: #{tpu_custom_call.1} parent=1 // pred_region
      _
    $region9: #{tpu_custom_call.1} parent=1 // pred_fallthru
      _
    // Predicated region
    $region10: #{tpu_custom_call.1} parent=1 // pred_check
      _
    $region11: #{tpu_custom_call.1} parent=1 // pred_check_branch
      %24 = sbr.rel (0) target = $region13
    $region12: #{tpu_custom_call.1} parent=1 // pred_region
      %25 = dma.done [#allocation3], 64
    $region13: #{tpu_custom_call.1} parent=1 // pred_fallthru
      _
    %v26 = vld [vmem:[#allocation2] sm:$0x3]
    %v27 = vld [vmem:[#allocation2 + $0x2] sm:$0x3]
    %v28 = vld [vmem:[%s1] sm:$0x3]
    %v29 = vadd.f32 %v26, %v28
    %v30 = vadd.f32 %v27, %v28
    %v31 = vlaneseq
    %vm32 = vcmp.ge.s32.totalorder %v31, 0
    %vm33 = vcmp.lt.s32.totalorder %v31, 256
    %vm34 = vmand %vm32, %vm33
    %35 = vst.msk [vmem:[#allocation5] sm:$0x3] %vm34, %v29
    %36 = vst.msk [vmem:[#allocation5 + $0x2] sm:$0x3] %vm34, %v30
    // Predicated region
    $region14: #{tpu_custom_call.1} parent=1 // pred_check
      _
    $region15: #{tpu_custom_call.1} parent=1 // pred_check_branch
      %38 = sbr.rel (0) target = $region17
    $region16: #{tpu_custom_call.1} parent=1 // pred_region
      %s40 = ssub.s32 64, 64
      %41 = vsyncadd [#allocation4], %s40
      %s42 = sshll.u32 [#allocation5], 4
      %s43 = int_to_ptr.vmem [resolvable:$true] %s42
      %48 = dma.vmem_to_hbm [thread:$0]  %s43, 64, %s2, [#allocation4], 32, 32, 2
    $region17: #{tpu_custom_call.1} parent=1 // pred_fallthru
      _
    // Predicated region
    $region18: #{tpu_custom_call.1} parent=1 // pred_check
      _
    $region19: #{tpu_custom_call.1} parent=1 // pred_check_branch
      %50 = sbr.rel (0) target = $region21
    $region20: #{tpu_custom_call.1} parent=1 // pred_region
      %51 = dma.done [#allocation4], 64
    $region21: #{tpu_custom_call.1} parent=1 // pred_fallthru
      _
    %52 = vsyncpa [#allocation3], 1
    %53 = vsyncpa [#allocation4], 1

</llo_original>
